<compile_context>
chip_gen: v7x
topology: tpu7x:2x2x1
jax: 0.10.0
libtpu: 0.0.40
codegen_flags: <defaults>
</compile_context>

<pallas_src>
import jax
import jax.numpy as jnp
from jax import lax
from jax.experimental import pallas as pl
from jax.experimental.pallas import tpu as pltpu

D_IN = 2
HIDDEN = 16
D_OUT = 2
LANES = 128
SUBLANES = 8
CHUNK_ROWS = 32        # inner sub-chunk (rows of 128 lanes) -> ~20 live vregs
MAX_TILE_ROWS = 1024   # (2, 1024, 128) f32 block = 1 MiB per operand


def _mlp_kernel(w1_ref, b1_ref, w2_ref, b2_ref, y_ref, o_ref):
    # y_ref / o_ref: (2, tile_rows, 128) -- batch dense on sublanes AND lanes.
    # w1_ref (16,2), b1_ref (16,), w2_ref (2,16), b2_ref (2,) live in SMEM.
    tile_rows = y_ref.shape[1]
    chunk = next(c for c in (CHUNK_ROWS, 16, 8) if tile_rows % c == 0)
    n_chunks = tile_rows // chunk

    def body(c_idx, carry):
        r0 = pl.multiple_of(c_idx * chunk, chunk)
        y0 = y_ref[0, pl.ds(r0, chunk), :]          # (chunk, 128) dense slab
        y1 = y_ref[1, pl.ds(r0, chunk), :]
        out0 = None
        out1 = None
        # Statically unrolled over the 16 hidden units: scalar-broadcast VPU
        # mul/add from SMEM plus one tanh per unit on the EUP slot.
        for j in range(HIDDEN):
            h = jnp.tanh(w1_ref[j, 0] * y0 + w1_ref[j, 1] * y1 + b1_ref[j])
            if j == 0:
                out0 = w2_ref[0, j] * h + b2_ref[0]
                out1 = w2_ref[1, j] * h + b2_ref[1]
            else:
                out0 = out0 + w2_ref[0, j] * h
                out1 = out1 + w2_ref[1, j] * h
        o_ref[0, pl.ds(r0, chunk), :] = out0.astype(o_ref.dtype)
        o_ref[1, pl.ds(r0, chunk), :] = out1.astype(o_ref.dtype)
        return carry

    lax.fori_loop(0, n_chunks, body, 0, unroll=False)


def _choose_tiling(batch):
    """Return (padded 128-lane row count, tile_rows)."""
    b_rows = pl.cdiv(batch, LANES)
    b_rows = pl.cdiv(b_rows, SUBLANES) * SUBLANES            # sublane aligned
    # Aim for grid >= 2 (dual-TC sharding on v7x) with <= ~1 MiB blocks.
    half = max(SUBLANES, (b_rows // 2) // SUBLANES * SUBLANES)
    tile_rows = min(MAX_TILE_ROWS, half)
    b_rows = pl.cdiv(b_rows, tile_rows) * tile_rows          # pad to tile grid
    return b_rows, tile_rows


def ode_func_forward_fm(t, y_fm, params):
    """ODEFunc.forward on feature-major state: y_fm (2, B) -> (2, B).

    No HBM transposes: keep the ODE state feature-major across the solver so
    the batch axis stays lane/sublane-dense in HBM and VMEM.
    """
    del t  # unused, as in the PyTorch module
    W1, b1, W2, b2 = params   # PyTorch layout: (16,2), (16,), (2,16), (2,)
    d_in, batch = y_fm.shape
    assert d_in == D_IN

    b_rows, tile_rows = _choose_tiling(batch)
    padded = b_rows * LANES
    if padded != batch:
        y_fm = jnp.pad(y_fm, ((0, 0), (0, padded - batch)))
    y3 = y_fm.reshape(D_IN, b_rows, LANES)                   # free reshape

    block_bytes = (D_IN + D_OUT) * tile_rows * LANES * 4
    vmem_limit = min(32 * 1024 * 1024, max(16 * 1024 * 1024, 4 * block_bytes))

    cost = pl.CostEstimate(
        flops=2 * padded * (D_IN * HIDDEN + HIDDEN * D_OUT),
        transcendentals=HIDDEN * padded,
        bytes_accessed=4 * padded * (D_IN + D_OUT)
        + 4 * (HIDDEN * D_IN + HIDDEN + D_OUT * HIDDEN + D_OUT),
    )

    smem_spec = pl.BlockSpec(memory_space=pltpu.MemorySpace.SMEM)
    out3 = pl.pallas_call(
        _mlp_kernel,
        out_shape=jax.ShapeDtypeStruct((D_OUT, b_rows, LANES), y_fm.dtype),
        grid_spec=pltpu.PrefetchScalarGridSpec(
            num_scalar_prefetch=0,
            grid=(b_rows // tile_rows,),
            in_specs=[
                smem_spec,                                             # W1
                smem_spec,                                             # b1
                smem_spec,                                             # W2
                smem_spec,                                             # b2
                pl.BlockSpec((D_IN, tile_rows, LANES), lambda i: (0, i, 0)),
            ],
            out_specs=pl.BlockSpec((D_OUT, tile_rows, LANES),
                                   lambda i: (0, i, 0)),
        ),
        compiler_params=pltpu.CompilerParams(
            dimension_semantics=("parallel",),
            vmem_limit_bytes=vmem_limit,
        ),
        cost_estimate=cost,
    )(W1, b1, W2, b2, y3)

    out_fm = out3.reshape(D_OUT, padded)
    if padded != batch:
        out_fm = out_fm[:, :batch]
    return out_fm


def ode_func_forward(t, y, params):
    """PyTorch-interface wrapper: y (B, 2) -> (B, 2).

    The transposes live only at this API boundary; a real solver should call
    ode_func_forward_fm and keep the state feature-major end to end.
    """
    out_fm = ode_func_forward_fm(t, y.T, params)
    return out_fm.T


def init_params(key):
    # Matches nn.init.normal_(weight, mean=0, std=0.1); biases = 0.
    # Weights kept in PyTorch (out_features, in_features) layout.
    k1, k2 = jax.random.split(key)
    W1 = 0.1 * jax.random.normal(k1, (HIDDEN, D_IN), dtype=jnp.float32)
    b1 = jnp.zeros((HIDDEN,), dtype=jnp.float32)
    W2 = 0.1 * jax.random.normal(k2, (D_OUT, HIDDEN), dtype=jnp.float32)
    b2 = jnp.zeros((D_OUT,), dtype=jnp.float32)
    return W1, b1, W2, b2


if __name__ == "__main__":
    key = jax.random.PRNGKey(0)
    pkey, ykey = jax.random.split(key)
    params = init_params(pkey)
    W1, b1, W2, b2 = params

    def reference(y):
        return jnp.tanh(y @ W1.T + b1) @ W2.T + b2

    t = jnp.float32(0.0)  # unused, as in the PyTorch module

    # Small test, PyTorch-style (B, 2) interface (exercises the padding path).
    y_small = jax.random.normal(ykey, (8, 2), dtype=jnp.float32)
    out_small = jax.block_until_ready(ode_func_forward(t, y_small, params))
    assert out_small.shape == (8, 2)
    assert jnp.allclose(out_small, reference(y_small), atol=1e-5, rtol=1e-5)

    # Feature-major multi-tile test: grid >= 2, batch dense on sublanes+lanes,
    # no transposes anywhere on this path.
    y_big = jax.random.normal(ykey, (2048, 2), dtype=jnp.float32)
    out_big_fm = jax.block_until_ready(ode_func_forward_fm(t, y_big.T, params))
    assert out_big_fm.shape == (2, 2048)
    assert jnp.allclose(out_big_fm.T, reference(y_big), atol=1e-5, rtol=1e-5)

    print("KERNEL_OK")
</pallas_src>

<mosaic_0001>
module attributes {stable_mosaic.version = 11 : i64} {
  func.func @_mlp_kernel(%arg0: i32, %arg1: memref<16x2xf32, #tpu.memory_space<smem>>, %arg2: memref<16xf32, #tpu.memory_space<smem>>, %arg3: memref<2x16xf32, #tpu.memory_space<smem>>, %arg4: memref<2xf32, #tpu.memory_space<smem>>, %arg5: memref<2x8x128xf32, #tpu.memory_space<vmem>>, %arg6: memref<2x8x128xf32, #tpu.memory_space<vmem>>) attributes {dimension_semantics = [#tpu.dimension_semantics<parallel>], iteration_bounds = array<i64: 1>, scalar_prefetch = 0 : i64, scratch_operands = 0 : i64, tpu.core_type = #tpu.core_type<tc>, window_params = [{transform_indices = @transform_0, window_bounds = array<i64: 16, 2>}, {transform_indices = @transform_1, window_bounds = array<i64: 16>}, {transform_indices = @transform_2, window_bounds = array<i64: 2, 16>}, {transform_indices = @transform_3, window_bounds = array<i64: 2>}, {transform_indices = @transform_4, window_bounds = array<i64: 2, 8, 128>}, {transform_indices = @transform_5, window_bounds = array<i64: 2, 8, 128>}]} {
    %c0_i32 = arith.constant 0 : i32
    %c8_i32 = arith.constant 8 : i32
    %0 = arith.muli %c0_i32, %c8_i32 : i32
    %1 = tpu.assume_multiple %0, 8 : i32
    %c0 = arith.constant 0 : index
    %2 = arith.index_cast %1 : i32 to index
    %c0_0 = arith.constant 0 : index
    %3 = vector.load %arg5[%c0, %2, %c0_0] : memref<2x8x128xf32, #tpu.memory_space<vmem>>, vector<1x8x128xf32>
    %4 = vector.shape_cast %3 : vector<1x8x128xf32> to vector<8x128xf32>
    %c1 = arith.constant 1 : index
    %5 = arith.index_cast %1 : i32 to index
    %c0_1 = arith.constant 0 : index
    %6 = vector.load %arg5[%c1, %5, %c0_1] : memref<2x8x128xf32, #tpu.memory_space<vmem>>, vector<1x8x128xf32>
    %7 = vector.shape_cast %6 : vector<1x8x128xf32> to vector<8x128xf32>
    %c0_2 = arith.constant 0 : index
    %c0_3 = arith.constant 0 : index
    %8 = memref.load %arg1[%c0_2, %c0_3] : memref<16x2xf32, #tpu.memory_space<smem>>
    %9 = vector.broadcast %8 : f32 to vector<8x128xf32>
    %10 = arith.mulf %9, %4 : vector<8x128xf32>
    %c0_4 = arith.constant 0 : index
    %c1_5 = arith.constant 1 : index
    %11 = memref.load %arg1[%c0_4, %c1_5] : memref<16x2xf32, #tpu.memory_space<smem>>
    %12 = vector.broadcast %11 : f32 to vector<8x128xf32>
    %13 = arith.mulf %12, %7 : vector<8x128xf32>
    %14 = arith.addf %10, %13 : vector<8x128xf32>
    %c0_6 = arith.constant 0 : index
    %15 = memref.load %arg2[%c0_6] : memref<16xf32, #tpu.memory_space<smem>>
    %16 = vector.broadcast %15 : f32 to vector<8x128xf32>
    %17 = arith.addf %14, %16 : vector<8x128xf32>
    %18 = math.tanh %17 : vector<8x128xf32>
    %c0_7 = arith.constant 0 : index
    %c0_8 = arith.constant 0 : index
    %19 = memref.load %arg3[%c0_7, %c0_8] : memref<2x16xf32, #tpu.memory_space<smem>>
    %20 = vector.broadcast %19 : f32 to vector<8x128xf32>
    %21 = arith.mulf %20, %18 : vector<8x128xf32>
    %c0_9 = arith.constant 0 : index
    %22 = memref.load %arg4[%c0_9] : memref<2xf32, #tpu.memory_space<smem>>
    %23 = vector.broadcast %22 : f32 to vector<8x128xf32>
    %24 = arith.addf %21, %23 : vector<8x128xf32>
    %c1_10 = arith.constant 1 : index
    %c0_11 = arith.constant 0 : index
    %25 = memref.load %arg3[%c1_10, %c0_11] : memref<2x16xf32, #tpu.memory_space<smem>>
    %26 = vector.broadcast %25 : f32 to vector<8x128xf32>
    %27 = arith.mulf %26, %18 : vector<8x128xf32>
    %c1_12 = arith.constant 1 : index
    %28 = memref.load %arg4[%c1_12] : memref<2xf32, #tpu.memory_space<smem>>
    %29 = vector.broadcast %28 : f32 to vector<8x128xf32>
    %30 = arith.addf %27, %29 : vector<8x128xf32>
    %c1_13 = arith.constant 1 : index
    %c0_14 = arith.constant 0 : index
    %31 = memref.load %arg1[%c1_13, %c0_14] : memref<16x2xf32, #tpu.memory_space<smem>>
    %32 = vector.broadcast %31 : f32 to vector<8x128xf32>
    %33 = arith.mulf %32, %4 : vector<8x128xf32>
    %c1_15 = arith.constant 1 : index
    %c1_16 = arith.constant 1 : index
    %34 = memref.load %arg1[%c1_15, %c1_16] : memref<16x2xf32, #tpu.memory_space<smem>>
    %35 = vector.broadcast %34 : f32 to vector<8x128xf32>
    %36 = arith.mulf %35, %7 : vector<8x128xf32>
    %37 = arith.addf %33, %36 : vector<8x128xf32>
    %c1_17 = arith.constant 1 : index
    %38 = memref.load %arg2[%c1_17] : memref<16xf32, #tpu.memory_space<smem>>
    %39 = vector.broadcast %38 : f32 to vector<8x128xf32>
    %40 = arith.addf %37, %39 : vector<8x128xf32>
    %41 = math.tanh %40 : vector<8x128xf32>
    %c0_18 = arith.constant 0 : index
    %c1_19 = arith.constant 1 : index
    %42 = memref.load %arg3[%c0_18, %c1_19] : memref<2x16xf32, #tpu.memory_space<smem>>
    %43 = vector.broadcast %42 : f32 to vector<8x128xf32>
    %44 = arith.mulf %43, %41 : vector<8x128xf32>
    %45 = arith.addf %24, %44 : vector<8x128xf32>
    %c1_20 = arith.constant 1 : index
    %c1_21 = arith.constant 1 : index
    %46 = memref.load %arg3[%c1_20, %c1_21] : memref<2x16xf32, #tpu.memory_space<smem>>
    %47 = vector.broadcast %46 : f32 to vector<8x128xf32>
    %48 = arith.mulf %47, %41 : vector<8x128xf32>
    %49 = arith.addf %30, %48 : vector<8x128xf32>
    %c2 = arith.constant 2 : index
    %c0_22 = arith.constant 0 : index
    %50 = memref.load %arg1[%c2, %c0_22] : memref<16x2xf32, #tpu.memory_space<smem>>
    %51 = vector.broadcast %50 : f32 to vector<8x128xf32>
    %52 = arith.mulf %51, %4 : vector<8x128xf32>
    %c2_23 = arith.constant 2 : index
    %c1_24 = arith.constant 1 : index
    %53 = memref.load %arg1[%c2_23, %c1_24] : memref<16x2xf32, #tpu.memory_space<smem>>
    %54 = vector.broadcast %53 : f32 to vector<8x128xf32>
    %55 = arith.mulf %54, %7 : vector<8x128xf32>
    %56 = arith.addf %52, %55 : vector<8x128xf32>
    %c2_25 = arith.constant 2 : index
    %57 = memref.load %arg2[%c2_25] : memref<16xf32, #tpu.memory_space<smem>>
    %58 = vector.broadcast %57 : f32 to vector<8x128xf32>
    %59 = arith.addf %56, %58 : vector<8x128xf32>
    %60 = math.tanh %59 : vector<8x128xf32>
    %c0_26 = arith.constant 0 : index
    %c2_27 = arith.constant 2 : index
    %61 = memref.load %arg3[%c0_26, %c2_27] : memref<2x16xf32, #tpu.memory_space<smem>>
    %62 = vector.broadcast %61 : f32 to vector<8x128xf32>
    %63 = arith.mulf %62, %60 : vector<8x128xf32>
    %64 = arith.addf %45, %63 : vector<8x128xf32>
    %c1_28 = arith.constant 1 : index
    %c2_29 = arith.constant 2 : index
    %65 = memref.load %arg3[%c1_28, %c2_29] : memref<2x16xf32, #tpu.memory_space<smem>>
    %66 = vector.broadcast %65 : f32 to vector<8x128xf32>
    %67 = arith.mulf %66, %60 : vector<8x128xf32>
    %68 = arith.addf %49, %67 : vector<8x128xf32>
    %c3 = arith.constant 3 : index
    %c0_30 = arith.constant 0 : index
    %69 = memref.load %arg1[%c3, %c0_30] : memref<16x2xf32, #tpu.memory_space<smem>>
    %70 = vector.broadcast %69 : f32 to vector<8x128xf32>
    %71 = arith.mulf %70, %4 : vector<8x128xf32>
    %c3_31 = arith.constant 3 : index
    %c1_32 = arith.constant 1 : index
    %72 = memref.load %arg1[%c3_31, %c1_32] : memref<16x2xf32, #tpu.memory_space<smem>>
    %73 = vector.broadcast %72 : f32 to vector<8x128xf32>
    %74 = arith.mulf %73, %7 : vector<8x128xf32>
    %75 = arith.addf %71, %74 : vector<8x128xf32>
    %c3_33 = arith.constant 3 : index
    %76 = memref.load %arg2[%c3_33] : memref<16xf32, #tpu.memory_space<smem>>
    %77 = vector.broadcast %76 : f32 to vector<8x128xf32>
    %78 = arith.addf %75, %77 : vector<8x128xf32>
    %79 = math.tanh %78 : vector<8x128xf32>
    %c0_34 = arith.constant 0 : index
    %c3_35 = arith.constant 3 : index
    %80 = memref.load %arg3[%c0_34, %c3_35] : memref<2x16xf32, #tpu.memory_space<smem>>
    %81 = vector.broadcast %80 : f32 to vector<8x128xf32>
    %82 = arith.mulf %81, %79 : vector<8x128xf32>
    %83 = arith.addf %64, %82 : vector<8x128xf32>
    %c1_36 = arith.constant 1 : index
    %c3_37 = arith.constant 3 : index
    %84 = memref.load %arg3[%c1_36, %c3_37] : memref<2x16xf32, #tpu.memory_space<smem>>
    %85 = vector.broadcast %84 : f32 to vector<8x128xf32>
    %86 = arith.mulf %85, %79 : vector<8x128xf32>
    %87 = arith.addf %68, %86 : vector<8x128xf32>
    %c4 = arith.constant 4 : index
    %c0_38 = arith.constant 0 : index
    %88 = memref.load %arg1[%c4, %c0_38] : memref<16x2xf32, #tpu.memory_space<smem>>
    %89 = vector.broadcast %88 : f32 to vector<8x128xf32>
    %90 = arith.mulf %89, %4 : vector<8x128xf32>
    %c4_39 = arith.constant 4 : index
    %c1_40 = arith.constant 1 : index
    %91 = memref.load %arg1[%c4_39, %c1_40] : memref<16x2xf32, #tpu.memory_space<smem>>
    %92 = vector.broadcast %91 : f32 to vector<8x128xf32>
    %93 = arith.mulf %92, %7 : vector<8x128xf32>
    %94 = arith.addf %90, %93 : vector<8x128xf32>
    %c4_41 = arith.constant 4 : index
    %95 = memref.load %arg2[%c4_41] : memref<16xf32, #tpu.memory_space<smem>>
    %96 = vector.broadcast %95 : f32 to vector<8x128xf32>
    %97 = arith.addf %94, %96 : vector<8x128xf32>
    %98 = math.tanh %97 : vector<8x128xf32>
    %c0_42 = arith.constant 0 : index
    %c4_43 = arith.constant 4 : index
    %99 = memref.load %arg3[%c0_42, %c4_43] : memref<2x16xf32, #tpu.memory_space<smem>>
    %100 = vector.broadcast %99 : f32 to vector<8x128xf32>
    %101 = arith.mulf %100, %98 : vector<8x128xf32>
    %102 = arith.addf %83, %101 : vector<8x128xf32>
    %c1_44 = arith.constant 1 : index
    %c4_45 = arith.constant 4 : index
    %103 = memref.load %arg3[%c1_44, %c4_45] : memref<2x16xf32, #tpu.memory_space<smem>>
    %104 = vector.broadcast %103 : f32 to vector<8x128xf32>
    %105 = arith.mulf %104, %98 : vector<8x128xf32>
    %106 = arith.addf %87, %105 : vector<8x128xf32>
    %c5 = arith.constant 5 : index
    %c0_46 = arith.constant 0 : index
    %107 = memref.load %arg1[%c5, %c0_46] : memref<16x2xf32, #tpu.memory_space<smem>>
    %108 = vector.broadcast %107 : f32 to vector<8x128xf32>
    %109 = arith.mulf %108, %4 : vector<8x128xf32>
    %c5_47 = arith.constant 5 : index
    %c1_48 = arith.constant 1 : index
    %110 = memref.load %arg1[%c5_47, %c1_48] : memref<16x2xf32, #tpu.memory_space<smem>>
    %111 = vector.broadcast %110 : f32 to vector<8x128xf32>
    %112 = arith.mulf %111, %7 : vector<8x128xf32>
    %113 = arith.addf %109, %112 : vector<8x128xf32>
    %c5_49 = arith.constant 5 : index
    %114 = memref.load %arg2[%c5_49] : memref<16xf32, #tpu.memory_space<smem>>
    %115 = vector.broadcast %114 : f32 to vector<8x128xf32>
    %116 = arith.addf %113, %115 : vector<8x128xf32>
    %117 = math.tanh %116 : vector<8x128xf32>
    %c0_50 = arith.constant 0 : index
    %c5_51 = arith.constant 5 : index
    %118 = memref.load %arg3[%c0_50, %c5_51] : memref<2x16xf32, #tpu.memory_space<smem>>
    %119 = vector.broadcast %118 : f32 to vector<8x128xf32>
    %120 = arith.mulf %119, %117 : vector<8x128xf32>
    %121 = arith.addf %102, %120 : vector<8x128xf32>
    %c1_52 = arith.constant 1 : index
    %c5_53 = arith.constant 5 : index
    %122 = memref.load %arg3[%c1_52, %c5_53] : memref<2x16xf32, #tpu.memory_space<smem>>
    %123 = vector.broadcast %122 : f32 to vector<8x128xf32>
    %124 = arith.mulf %123, %117 : vector<8x128xf32>
    %125 = arith.addf %106, %124 : vector<8x128xf32>
    %c6 = arith.constant 6 : index
    %c0_54 = arith.constant 0 : index
    %126 = memref.load %arg1[%c6, %c0_54] : memref<16x2xf32, #tpu.memory_space<smem>>
    %127 = vector.broadcast %126 : f32 to vector<8x128xf32>
    %128 = arith.mulf %127, %4 : vector<8x128xf32>
    %c6_55 = arith.constant 6 : index
    %c1_56 = arith.constant 1 : index
    %129 = memref.load %arg1[%c6_55, %c1_56] : memref<16x2xf32, #tpu.memory_space<smem>>
    %130 = vector.broadcast %129 : f32 to vector<8x128xf32>
    %131 = arith.mulf %130, %7 : vector<8x128xf32>
    %132 = arith.addf %128, %131 : vector<8x128xf32>
    %c6_57 = arith.constant 6 : index
    %133 = memref.load %arg2[%c6_57] : memref<16xf32, #tpu.memory_space<smem>>
    %134 = vector.broadcast %133 : f32 to vector<8x128xf32>
    %135 = arith.addf %132, %134 : vector<8x128xf32>
    %136 = math.tanh %135 : vector<8x128xf32>
    %c0_58 = arith.constant 0 : index
    %c6_59 = arith.constant 6 : index
    %137 = memref.load %arg3[%c0_58, %c6_59] : memref<2x16xf32, #tpu.memory_space<smem>>
    %138 = vector.broadcast %137 : f32 to vector<8x128xf32>
    %139 = arith.mulf %138, %136 : vector<8x128xf32>
    %140 = arith.addf %121, %139 : vector<8x128xf32>
    %c1_60 = arith.constant 1 : index
    %c6_61 = arith.constant 6 : index
    %141 = memref.load %arg3[%c1_60, %c6_61] : memref<2x16xf32, #tpu.memory_space<smem>>
    %142 = vector.broadcast %141 : f32 to vector<8x128xf32>
    %143 = arith.mulf %142, %136 : vector<8x128xf32>
    %144 = arith.addf %125, %143 : vector<8x128xf32>
    %c7 = arith.constant 7 : index
    %c0_62 = arith.constant 0 : index
    %145 = memref.load %arg1[%c7, %c0_62] : memref<16x2xf32, #tpu.memory_space<smem>>
    %146 = vector.broadcast %145 : f32 to vector<8x128xf32>
    %147 = arith.mulf %146, %4 : vector<8x128xf32>
    %c7_63 = arith.constant 7 : index
    %c1_64 = arith.constant 1 : index
    %148 = memref.load %arg1[%c7_63, %c1_64] : memref<16x2xf32, #tpu.memory_space<smem>>
    %149 = vector.broadcast %148 : f32 to vector<8x128xf32>
    %150 = arith.mulf %149, %7 : vector<8x128xf32>
    %151 = arith.addf %147, %150 : vector<8x128xf32>
    %c7_65 = arith.constant 7 : index
    %152 = memref.load %arg2[%c7_65] : memref<16xf32, #tpu.memory_space<smem>>
    %153 = vector.broadcast %152 : f32 to vector<8x128xf32>
    %154 = arith.addf %151, %153 : vector<8x128xf32>
    %155 = math.tanh %154 : vector<8x128xf32>
    %c0_66 = arith.constant 0 : index
    %c7_67 = arith.constant 7 : index
    %156 = memref.load %arg3[%c0_66, %c7_67] : memref<2x16xf32, #tpu.memory_space<smem>>
    %157 = vector.broadcast %156 : f32 to vector<8x128xf32>
    %158 = arith.mulf %157, %155 : vector<8x128xf32>
    %159 = arith.addf %140, %158 : vector<8x128xf32>
    %c1_68 = arith.constant 1 : index
    %c7_69 = arith.constant 7 : index
    %160 = memref.load %arg3[%c1_68, %c7_69] : memref<2x16xf32, #tpu.memory_space<smem>>
    %161 = vector.broadcast %160 : f32 to vector<8x128xf32>
    %162 = arith.mulf %161, %155 : vector<8x128xf32>
    %163 = arith.addf %144, %162 : vector<8x128xf32>
    %c8 = arith.constant 8 : index
    %c0_70 = arith.constant 0 : index
    %164 = memref.load %arg1[%c8, %c0_70] : memref<16x2xf32, #tpu.memory_space<smem>>
    %165 = vector.broadcast %164 : f32 to vector<8x128xf32>
    %166 = arith.mulf %165, %4 : vector<8x128xf32>
    %c8_71 = arith.constant 8 : index
    %c1_72 = arith.constant 1 : index
    %167 = memref.load %arg1[%c8_71, %c1_72] : memref<16x2xf32, #tpu.memory_space<smem>>
    %168 = vector.broadcast %167 : f32 to vector<8x128xf32>
    %169 = arith.mulf %168, %7 : vector<8x128xf32>
    %170 = arith.addf %166, %169 : vector<8x128xf32>
    %c8_73 = arith.constant 8 : index
    %171 = memref.load %arg2[%c8_73] : memref<16xf32, #tpu.memory_space<smem>>
    %172 = vector.broadcast %171 : f32 to vector<8x128xf32>
    %173 = arith.addf %170, %172 : vector<8x128xf32>
    %174 = math.tanh %173 : vector<8x128xf32>
    %c0_74 = arith.constant 0 : index
    %c8_75 = arith.constant 8 : index
    %175 = memref.load %arg3[%c0_74, %c8_75] : memref<2x16xf32, #tpu.memory_space<smem>>
    %176 = vector.broadcast %175 : f32 to vector<8x128xf32>
    %177 = arith.mulf %176, %174 : vector<8x128xf32>
    %178 = arith.addf %159, %177 : vector<8x128xf32>
    %c1_76 = arith.constant 1 : index
    %c8_77 = arith.constant 8 : index
    %179 = memref.load %arg3[%c1_76, %c8_77] : memref<2x16xf32, #tpu.memory_space<smem>>
    %180 = vector.broadcast %179 : f32 to vector<8x128xf32>
    %181 = arith.mulf %180, %174 : vector<8x128xf32>
    %182 = arith.addf %163, %181 : vector<8x128xf32>
    %c9 = arith.constant 9 : index
    %c0_78 = arith.constant 0 : index
    %183 = memref.load %arg1[%c9, %c0_78] : memref<16x2xf32, #tpu.memory_space<smem>>
    %184 = vector.broadcast %183 : f32 to vector<8x128xf32>
    %185 = arith.mulf %184, %4 : vector<8x128xf32>
    %c9_79 = arith.constant 9 : index
    %c1_80 = arith.constant 1 : index
    %186 = memref.load %arg1[%c9_79, %c1_80] : memref<16x2xf32, #tpu.memory_space<smem>>
    %187 = vector.broadcast %186 : f32 to vector<8x128xf32>
    %188 = arith.mulf %187, %7 : vector<8x128xf32>
    %189 = arith.addf %185, %188 : vector<8x128xf32>
    %c9_81 = arith.constant 9 : index
    %190 = memref.load %arg2[%c9_81] : memref<16xf32, #tpu.memory_space<smem>>
    %191 = vector.broadcast %190 : f32 to vector<8x128xf32>
    %192 = arith.addf %189, %191 : vector<8x128xf32>
    %193 = math.tanh %192 : vector<8x128xf32>
    %c0_82 = arith.constant 0 : index
    %c9_83 = arith.constant 9 : index
    %194 = memref.load %arg3[%c0_82, %c9_83] : memref<2x16xf32, #tpu.memory_space<smem>>
    %195 = vector.broadcast %194 : f32 to vector<8x128xf32>
    %196 = arith.mulf %195, %193 : vector<8x128xf32>
    %197 = arith.addf %178, %196 : vector<8x128xf32>
    %c1_84 = arith.constant 1 : index
    %c9_85 = arith.constant 9 : index
    %198 = memref.load %arg3[%c1_84, %c9_85] : memref<2x16xf32, #tpu.memory_space<smem>>
    %199 = vector.broadcast %198 : f32 to vector<8x128xf32>
    %200 = arith.mulf %199, %193 : vector<8x128xf32>
    %201 = arith.addf %182, %200 : vector<8x128xf32>
    %c10 = arith.constant 10 : index
    %c0_86 = arith.constant 0 : index
    %202 = memref.load %arg1[%c10, %c0_86] : memref<16x2xf32, #tpu.memory_space<smem>>
    %203 = vector.broadcast %202 : f32 to vector<8x128xf32>
    %204 = arith.mulf %203, %4 : vector<8x128xf32>
    %c10_87 = arith.constant 10 : index
    %c1_88 = arith.constant 1 : index
    %205 = memref.load %arg1[%c10_87, %c1_88] : memref<16x2xf32, #tpu.memory_space<smem>>
    %206 = vector.broadcast %205 : f32 to vector<8x128xf32>
    %207 = arith.mulf %206, %7 : vector<8x128xf32>
    %208 = arith.addf %204, %207 : vector<8x128xf32>
    %c10_89 = arith.constant 10 : index
    %209 = memref.load %arg2[%c10_89] : memref<16xf32, #tpu.memory_space<smem>>
    %210 = vector.broadcast %209 : f32 to vector<8x128xf32>
    %211 = arith.addf %208, %210 : vector<8x128xf32>
    %212 = math.tanh %211 : vector<8x128xf32>
    %c0_90 = arith.constant 0 : index
    %c10_91 = arith.constant 10 : index
    %213 = memref.load %arg3[%c0_90, %c10_91] : memref<2x16xf32, #tpu.memory_space<smem>>
    %214 = vector.broadcast %213 : f32 to vector<8x128xf32>
    %215 = arith.mulf %214, %212 : vector<8x128xf32>
    %216 = arith.addf %197, %215 : vector<8x128xf32>
    %c1_92 = arith.constant 1 : index
    %c10_93 = arith.constant 10 : index
    %217 = memref.load %arg3[%c1_92, %c10_93] : memref<2x16xf32, #tpu.memory_space<smem>>
    %218 = vector.broadcast %217 : f32 to vector<8x128xf32>
    %219 = arith.mulf %218, %212 : vector<8x128xf32>
    %220 = arith.addf %201, %219 : vector<8x128xf32>
    %c11 = arith.constant 11 : index
    %c0_94 = arith.constant 0 : index
    %221 = memref.load %arg1[%c11, %c0_94] : memref<16x2xf32, #tpu.memory_space<smem>>
    %222 = vector.broadcast %221 : f32 to vector<8x128xf32>
    %223 = arith.mulf %222, %4 : vector<8x128xf32>
    %c11_95 = arith.constant 11 : index
    %c1_96 = arith.constant 1 : index
    %224 = memref.load %arg1[%c11_95, %c1_96] : memref<16x2xf32, #tpu.memory_space<smem>>
    %225 = vector.broadcast %224 : f32 to vector<8x128xf32>
    %226 = arith.mulf %225, %7 : vector<8x128xf32>
    %227 = arith.addf %223, %226 : vector<8x128xf32>
    %c11_97 = arith.constant 11 : index
    %228 = memref.load %arg2[%c11_97] : memref<16xf32, #tpu.memory_space<smem>>
    %229 = vector.broadcast %228 : f32 to vector<8x128xf32>
    %230 = arith.addf %227, %229 : vector<8x128xf32>
    %231 = math.tanh %230 : vector<8x128xf32>
    %c0_98 = arith.constant 0 : index
    %c11_99 = arith.constant 11 : index
    %232 = memref.load %arg3[%c0_98, %c11_99] : memref<2x16xf32, #tpu.memory_space<smem>>
    %233 = vector.broadcast %232 : f32 to vector<8x128xf32>
    %234 = arith.mulf %233, %231 : vector<8x128xf32>
    %235 = arith.addf %216, %234 : vector<8x128xf32>
    %c1_100 = arith.constant 1 : index
    %c11_101 = arith.constant 11 : index
    %236 = memref.load %arg3[%c1_100, %c11_101] : memref<2x16xf32, #tpu.memory_space<smem>>
    %237 = vector.broadcast %236 : f32 to vector<8x128xf32>
    %238 = arith.mulf %237, %231 : vector<8x128xf32>
    %239 = arith.addf %220, %238 : vector<8x128xf32>
    %c12 = arith.constant 12 : index
    %c0_102 = arith.constant 0 : index
    %240 = memref.load %arg1[%c12, %c0_102] : memref<16x2xf32, #tpu.memory_space<smem>>
    %241 = vector.broadcast %240 : f32 to vector<8x128xf32>
    %242 = arith.mulf %241, %4 : vector<8x128xf32>
    %c12_103 = arith.constant 12 : index
    %c1_104 = arith.constant 1 : index
    %243 = memref.load %arg1[%c12_103, %c1_104] : memref<16x2xf32, #tpu.memory_space<smem>>
    %244 = vector.broadcast %243 : f32 to vector<8x128xf32>
    %245 = arith.mulf %244, %7 : vector<8x128xf32>
    %246 = arith.addf %242, %245 : vector<8x128xf32>
    %c12_105 = arith.constant 12 : index
    %247 = memref.load %arg2[%c12_105] : memref<16xf32, #tpu.memory_space<smem>>
    %248 = vector.broadcast %247 : f32 to vector<8x128xf32>
    %249 = arith.addf %246, %248 : vector<8x128xf32>
    %250 = math.tanh %249 : vector<8x128xf32>
    %c0_106 = arith.constant 0 : index
    %c12_107 = arith.constant 12 : index
    %251 = memref.load %arg3[%c0_106, %c12_107] : memref<2x16xf32, #tpu.memory_space<smem>>
    %252 = vector.broadcast %251 : f32 to vector<8x128xf32>
    %253 = arith.mulf %252, %250 : vector<8x128xf32>
    %254 = arith.addf %235, %253 : vector<8x128xf32>
    %c1_108 = arith.constant 1 : index
    %c12_109 = arith.constant 12 : index
    %255 = memref.load %arg3[%c1_108, %c12_109] : memref<2x16xf32, #tpu.memory_space<smem>>
    %256 = vector.broadcast %255 : f32 to vector<8x128xf32>
    %257 = arith.mulf %256, %250 : vector<8x128xf32>
    %258 = arith.addf %239, %257 : vector<8x128xf32>
    %c13 = arith.constant 13 : index
    %c0_110 = arith.constant 0 : index
    %259 = memref.load %arg1[%c13, %c0_110] : memref<16x2xf32, #tpu.memory_space<smem>>
    %260 = vector.broadcast %259 : f32 to vector<8x128xf32>
    %261 = arith.mulf %260, %4 : vector<8x128xf32>
    %c13_111 = arith.constant 13 : index
    %c1_112 = arith.constant 1 : index
    %262 = memref.load %arg1[%c13_111, %c1_112] : memref<16x2xf32, #tpu.memory_space<smem>>
    %263 = vector.broadcast %262 : f32 to vector<8x128xf32>
    %264 = arith.mulf %263, %7 : vector<8x128xf32>
    %265 = arith.addf %261, %264 : vector<8x128xf32>
    %c13_113 = arith.constant 13 : index
    %266 = memref.load %arg2[%c13_113] : memref<16xf32, #tpu.memory_space<smem>>
    %267 = vector.broadcast %266 : f32 to vector<8x128xf32>
    %268 = arith.addf %265, %267 : vector<8x128xf32>
    %269 = math.tanh %268 : vector<8x128xf32>
    %c0_114 = arith.constant 0 : index
    %c13_115 = arith.constant 13 : index
    %270 = memref.load %arg3[%c0_114, %c13_115] : memref<2x16xf32, #tpu.memory_space<smem>>
    %271 = vector.broadcast %270 : f32 to vector<8x128xf32>
    %272 = arith.mulf %271, %269 : vector<8x128xf32>
    %273 = arith.addf %254, %272 : vector<8x128xf32>
    %c1_116 = arith.constant 1 : index
    %c13_117 = arith.constant 13 : index
    %274 = memref.load %arg3[%c1_116, %c13_117] : memref<2x16xf32, #tpu.memory_space<smem>>
    %275 = vector.broadcast %274 : f32 to vector<8x128xf32>
    %276 = arith.mulf %275, %269 : vector<8x128xf32>
    %277 = arith.addf %258, %276 : vector<8x128xf32>
    %c14 = arith.constant 14 : index
    %c0_118 = arith.constant 0 : index
    %278 = memref.load %arg1[%c14, %c0_118] : memref<16x2xf32, #tpu.memory_space<smem>>
    %279 = vector.broadcast %278 : f32 to vector<8x128xf32>
    %280 = arith.mulf %279, %4 : vector<8x128xf32>
    %c14_119 = arith.constant 14 : index
    %c1_120 = arith.constant 1 : index
    %281 = memref.load %arg1[%c14_119, %c1_120] : memref<16x2xf32, #tpu.memory_space<smem>>
    %282 = vector.broadcast %281 : f32 to vector<8x128xf32>
    %283 = arith.mulf %282, %7 : vector<8x128xf32>
    %284 = arith.addf %280, %283 : vector<8x128xf32>
    %c14_121 = arith.constant 14 : index
    %285 = memref.load %arg2[%c14_121] : memref<16xf32, #tpu.memory_space<smem>>
    %286 = vector.broadcast %285 : f32 to vector<8x128xf32>
    %287 = arith.addf %284, %286 : vector<8x128xf32>
    %288 = math.tanh %287 : vector<8x128xf32>
    %c0_122 = arith.constant 0 : index
    %c14_123 = arith.constant 14 : index
    %289 = memref.load %arg3[%c0_122, %c14_123] : memref<2x16xf32, #tpu.memory_space<smem>>
    %290 = vector.broadcast %289 : f32 to vector<8x128xf32>
    %291 = arith.mulf %290, %288 : vector<8x128xf32>
    %292 = arith.addf %273, %291 : vector<8x128xf32>
    %c1_124 = arith.constant 1 : index
    %c14_125 = arith.constant 14 : index
    %293 = memref.load %arg3[%c1_124, %c14_125] : memref<2x16xf32, #tpu.memory_space<smem>>
    %294 = vector.broadcast %293 : f32 to vector<8x128xf32>
    %295 = arith.mulf %294, %288 : vector<8x128xf32>
    %296 = arith.addf %277, %295 : vector<8x128xf32>
    %c15 = arith.constant 15 : index
    %c0_126 = arith.constant 0 : index
    %297 = memref.load %arg1[%c15, %c0_126] : memref<16x2xf32, #tpu.memory_space<smem>>
    %298 = vector.broadcast %297 : f32 to vector<8x128xf32>
    %299 = arith.mulf %298, %4 : vector<8x128xf32>
    %c15_127 = arith.constant 15 : index
    %c1_128 = arith.constant 1 : index
    %300 = memref.load %arg1[%c15_127, %c1_128] : memref<16x2xf32, #tpu.memory_space<smem>>
    %301 = vector.broadcast %300 : f32 to vector<8x128xf32>
    %302 = arith.mulf %301, %7 : vector<8x128xf32>
    %303 = arith.addf %299, %302 : vector<8x128xf32>
    %c15_129 = arith.constant 15 : index
    %304 = memref.load %arg2[%c15_129] : memref<16xf32, #tpu.memory_space<smem>>
    %305 = vector.broadcast %304 : f32 to vector<8x128xf32>
    %306 = arith.addf %303, %305 : vector<8x128xf32>
    %307 = math.tanh %306 : vector<8x128xf32>
    %c0_130 = arith.constant 0 : index
    %c15_131 = arith.constant 15 : index
    %308 = memref.load %arg3[%c0_130, %c15_131] : memref<2x16xf32, #tpu.memory_space<smem>>
    %309 = vector.broadcast %308 : f32 to vector<8x128xf32>
    %310 = arith.mulf %309, %307 : vector<8x128xf32>
    %311 = arith.addf %292, %310 : vector<8x128xf32>
    %c1_132 = arith.constant 1 : index
    %c15_133 = arith.constant 15 : index
    %312 = memref.load %arg3[%c1_132, %c15_133] : memref<2x16xf32, #tpu.memory_space<smem>>
    %313 = vector.broadcast %312 : f32 to vector<8x128xf32>
    %314 = arith.mulf %313, %307 : vector<8x128xf32>
    %315 = arith.addf %296, %314 : vector<8x128xf32>
    %c0_134 = arith.constant 0 : index
    %316 = arith.index_cast %1 : i32 to index
    %c0_135 = arith.constant 0 : index
    %317 = vector.load %arg6[%c0_134, %316, %c0_135] : memref<2x8x128xf32, #tpu.memory_space<vmem>>, vector<1x8x128xf32>
    %318 = vector.shape_cast %317 : vector<1x8x128xf32> to vector<8x128xf32>
    %319 = vector.shape_cast %311 : vector<8x128xf32> to vector<1x8x128xf32>
    tpu.vector_store %arg6[%c0_134, %316, %c0_135], %319 {strides = array<i32>} : memref<2x8x128xf32, #tpu.memory_space<vmem>>, vector<1x8x128xf32>,
    %c1_136 = arith.constant 1 : index
    %320 = arith.index_cast %1 : i32 to index
    %c0_137 = arith.constant 0 : index
    %321 = vector.load %arg6[%c1_136, %320, %c0_137] : memref<2x8x128xf32, #tpu.memory_space<vmem>>, vector<1x8x128xf32>
    %322 = vector.shape_cast %321 : vector<1x8x128xf32> to vector<8x128xf32>
    %323 = vector.shape_cast %315 : vector<8x128xf32> to vector<1x8x128xf32>
    tpu.vector_store %arg6[%c1_136, %320, %c0_137], %323 {strides = array<i32>} : memref<2x8x128xf32, #tpu.memory_space<vmem>>, vector<1x8x128xf32>,
    %c1_i32 = arith.constant 1 : i32
    return
  }
  func.func @transform_0(%arg0: i32) -> (i32, i32) {
    %c0_i32 = arith.constant 0 : i32
    %c0_i32_0 = arith.constant 0 : i32
    %c0_i32_1 = arith.constant 0 : i32
    return %c0_i32, %c0_i32_0 : i32, i32
  }
  func.func @transform_1(%arg0: i32) -> i32 {
    %c0_i32 = arith.constant 0 : i32
    %c0_i32_0 = arith.constant 0 : i32
    return %c0_i32 : i32
  }
  func.func @transform_2(%arg0: i32) -> (i32, i32) {
    %c0_i32 = arith.constant 0 : i32
    %c0_i32_0 = arith.constant 0 : i32
    %c0_i32_1 = arith.constant 0 : i32
    return %c0_i32, %c0_i32_0 : i32, i32
  }
  func.func @transform_3(%arg0: i32) -> i32 {
    %c0_i32 = arith.constant 0 : i32
    %c0_i32_0 = arith.constant 0 : i32
    return %c0_i32 : i32
  }
  func.func @transform_4(%arg0: i32) -> (i32, i32, i32) {
    %c0_i32 = arith.constant 0 : i32
    %c0_i32_0 = arith.constant 0 : i32
    %c0_i32_1 = arith.constant 0 : i32
    return %c0_i32, %arg0, %c0_i32_0 : i32, i32, i32
  }
  func.func @transform_5(%arg0: i32) -> (i32, i32, i32) {
    %c0_i32 = arith.constant 0 : i32
    %c0_i32_0 = arith.constant 0 : i32
    %c0_i32_1 = arith.constant 0 : i32
    return %c0_i32, %arg0, %c0_i32_0 : i32, i32, i32
  }
}

</mosaic_0001>

<llo_original>
// kernel: tpu_custom_call.1
$region0: #{tpu_custom_call.1}
  #allocation0 [shape = 'u32[]', space=smem, size = 0x4, offset = 0x4, fixed_abs, tag = 'smem constant byte address 0x4 - core index']
  #allocation1 [shape = 'u32[144,128]{1,0:T(1,128)}', space=vmem, size = 0x12000, scoped, tag = 'internal scratch']
  %s0 = inlined_call_operand.vmem [shape: f32[16,2], index: 0, kind: input, shape index: {}]
  %s1 = inlined_call_operand.vmem [shape: f32[16], index: 1, kind: input, shape index: {}]
  %s2 = inlined_call_operand.vmem [shape: f32[2,16], index: 2, kind: input, shape index: {}]
  %s3 = inlined_call_operand.vmem [shape: f32[2], index: 3, kind: input, shape index: {}]
  %s4 = inlined_call_operand.vmem [shape: f32[2,8,128], index: 4, kind: input, shape index: {}]
  %s5 = inlined_call_operand.hbm [shape: f32[2,8,128], index: 5, kind: output, shape index: {}]
  %s6 = sld [smem:[#allocation0]]
  $region46: #{tpu_custom_call.1} parent=0
    _
  %s8 = ssub.s32 1, %s6
  %s9 = scalar_select 0, %s8, %s6
  $region1: #{tpu_custom_call.1} parent=0
    #allocation2 [shape = 'u8[8192]{0}', space=smem, size = 0x2000, scoped, tag = 'input window, operand 0, single buffered']
    #allocation3 [shape = 's32[1]{0}', space=sflag, size = 0x4, scoped, tag = 'scoped memory for tpu_custom_call.1']
    #allocation4 [shape = 's32[1]{0}', space=sflag, size = 0x4, scoped, tag = 'scoped memory for tpu_custom_call.1']
    #allocation5 [shape = 'u8[512]{0}', space=smem, size = 0x200, scoped, tag = 'input window, operand 1, single buffered']
    #allocation6 [shape = 's32[1]{0}', space=sflag, size = 0x4, scoped, tag = 'scoped memory for tpu_custom_call.1']
    #allocation7 [shape = 'u8[1024]{0}', space=smem, size = 0x400, scoped, tag = 'input window, operand 2, single buffered']
    #allocation8 [shape = 'u8[512]{0}', space=smem, size = 0x200, scoped, tag = 'input window, operand 3, single buffered']
    #allocation9 [shape = 's32[1]{0}', space=sflag, size = 0x4, scoped, tag = 'scoped memory for tpu_custom_call.1']
    #allocation10 [shape = 'u8[8192]{0}', space=vmem, size = 0x2000, scoped, tag = 'output window, operand 0, single buffered']
    %10 = vsyncpa [#allocation4], 0
    %11 = vsyncpa [#allocation6], 0
    %12 = vsyncpa [#allocation9], 0
    %13 = vsyncpa [#allocation3], 0
    // Predicated region
    $region2: #{tpu_custom_call.1} parent=1 // pred_check
      _
    $region3: #{tpu_custom_call.1} parent=1 // pred_check_branch
      %15 = sbr.rel (0) target = $region5
    $region4: #{tpu_custom_call.1} parent=1 // pred_region
      %s17 = ssub.s32 256, 256
      %18 = vsyncadd [#allocation4], %s17
      %s19 = sshll.u32 %s0, 4
      %s20 = int_to_ptr.vmem [resolvable:$true] %s19
      %25 = dma.vmem_to_smem %s20, 256, [#allocation2], [#allocation4], 128, 128, 8
    $region5: #{tpu_custom_call.1} parent=1 // pred_fallthru
      _
    // Predicated region
    $region6: #{tpu_custom_call.1} parent=1 // pred_check
      _
    $region7: #{tpu_custom_call.1} parent=1 // pred_check_branch
      %27 = sbr.rel (0) target = $region9
    $region8: #{tpu_custom_call.1} parent=1 // pred_region
      %s29 = ssub.s32 16, 16
      %30 = vsyncadd [#allocation6], %s29
      %s32 = sshll.u32 %s1, 4
      %s33 = int_to_ptr.vmem [resolvable:$true] %s32
      %35 = dma.vmem_to_smem %s33, 16, [#allocation5], [#allocation6]
    $region9: #{tpu_custom_call.1} parent=1 // pred_fallthru
      _
    // Predicated region
    $region10: #{tpu_custom_call.1} parent=1 // pred_check
      _
    $region11: #{tpu_custom_call.1} parent=1 // pred_check_branch
      %37 = sbr.rel (0) target = $region13
    $region12: #{tpu_custom_call.1} parent=1 // pred_region
      %s39 = ssub.s32 32, 32
      %40 = vsyncadd [#allocation6], %s39
      %s42 = sshll.u32 %s2, 4
      %s43 = int_to_ptr.vmem [resolvable:$true] %s42
      %45 = dma.vmem_to_smem %s43, 32, [#allocation7], [#allocation6]
    $region13: #{tpu_custom_call.1} parent=1 // pred_fallthru
      _
    // Predicated region
    $region14: #{tpu_custom_call.1} parent=1 // pred_check
      _
    $region15: #{tpu_custom_call.1} parent=1 // pred_check_branch
      %47 = sbr.rel (0) target = $region17
    $region16: #{tpu_custom_call.1} parent=1 // pred_region
      %s49 = ssub.s32 16, 16
      %50 = vsyncadd [#allocation9], %s49
      %s52 = sshll.u32 %s3, 4
      %s53 = int_to_ptr.vmem [resolvable:$true] %s52
      %55 = dma.vmem_to_smem %s53, 16, [#allocation8], [#allocation9]
    $region17: #{tpu_custom_call.1} parent=1 // pred_fallthru
      _
    // Predicated region
    $region18: #{tpu_custom_call.1} parent=1 // pred_check
      _
    $region19: #{tpu_custom_call.1} parent=1 // pred_check_branch
      %57 = sbr.rel (0) target = $region21
    $region20: #{tpu_custom_call.1} parent=1 // pred_region
      _
    $region21: #{tpu_custom_call.1} parent=1 // pred_fallthru
      _
    // Predicated region
    $region22: #{tpu_custom_call.1} parent=1 // pred_check
      _
    $region23: #{tpu_custom_call.1} parent=1 // pred_check_branch
      %59 = sbr.rel (0) target = $region25
    $region24: #{tpu_custom_call.1} parent=1 // pred_region
      %60 = dma.done [#allocation4], 256
    $region25: #{tpu_custom_call.1} parent=1 // pred_fallthru
      _
    // Predicated region
    $region26: #{tpu_custom_call.1} parent=1 // pred_check
      _
    $region27: #{tpu_custom_call.1} parent=1 // pred_check_branch
      %62 = sbr.rel (0) target = $region29
    $region28: #{tpu_custom_call.1} parent=1 // pred_region
      %63 = dma.done [#allocation6], 16
    $region29: #{tpu_custom_call.1} parent=1 // pred_fallthru
      _
    // Predicated region
    $region30: #{tpu_custom_call.1} parent=1 // pred_check
      _
    $region31: #{tpu_custom_call.1} parent=1 // pred_check_branch
      %65 = sbr.rel (0) target = $region33
    $region32: #{tpu_custom_call.1} parent=1 // pred_region
      %66 = dma.done [#allocation6], 32
    $region33: #{tpu_custom_call.1} parent=1 // pred_fallthru
      _
    // Predicated region
    $region34: #{tpu_custom_call.1} parent=1 // pred_check
      _
    $region35: #{tpu_custom_call.1} parent=1 // pred_check_branch
      %68 = sbr.rel (0) target = $region37
    $region36: #{tpu_custom_call.1} parent=1 // pred_region
      %69 = dma.done [#allocation9], 16
    $region37: #{tpu_custom_call.1} parent=1 // pred_fallthru
      _
    %70 = sfence
    %v71 = vld [vmem:[%s4] sm:$0xff]
    %s72 = sadd.s32 0, 8
    %s73 = scalar_lea.vmem %s4, %s72
    %v74 = vld [vmem:[%s73] sm:$0xff]
    %s75 = sld [smem:[#allocation2]]
    %v76 = vstv %s75
    %v77 = vmul.f32 %v76, %v71
    %s78 = sld [smem:[#allocation2 + $0x1]]
    %v79 = vstv %s78
    %v80 = vmul.f32 %v79, %v74
    %v81 = vadd.f32 %v77, %v80
    %s82 = sld [smem:[#allocation5]]
    %v83 = vstv %s82
    %v84 = vadd.f32 %v81, %v83
    %v85 = vtanh.pop %v84
    %s86 = sld [smem:[#allocation7]]
    %v87 = vstv %s86
    %v88 = vmul.f32 %v87, %v85
    %s89 = sld [smem:[#allocation8]]
    %v90 = vstv %s89
    %v91 = vadd.f32 %v88, %v90
    %s92 = sld [smem:[#allocation7 + $0x80]]
    %v93 = vstv %s92
    %v94 = vmul.f32 %v93, %v85
    %s95 = sld [smem:[#allocation8 + $0x1]]
    %v96 = vstv %s95
    %v97 = vadd.f32 %v94, %v96
    %s98 = sld [smem:[#allocation2 + $0x80]]
    %v99 = vstv %s98
    %v100 = vmul.f32 %v99, %v71
    %s101 = sld [smem:[#allocation2 + $0x81]]
    %v102 = vstv %s101
    %v103 = vmul.f32 %v102, %v74
    %v104 = vadd.f32 %v100, %v103
    %s105 = sld [smem:[#allocation5 + $0x1]]
    %v106 = vstv %s105
    %v107 = vadd.f32 %v104, %v106
    %v108 = vtanh.pop %v107
    %s109 = sld [smem:[#allocation7 + $0x1]]
    %v110 = vstv %s109
    %v111 = vmul.f32 %v110, %v108
    %v112 = vadd.f32 %v91, %v111
    %s113 = sld [smem:[#allocation7 + $0x81]]
    %v114 = vstv %s113
    %v115 = vmul.f32 %v114, %v108
    %v116 = vadd.f32 %v97, %v115
    %s117 = sld [smem:[#allocation2 + $0x100]]
    %v118 = vstv %s117
    %v119 = vmul.f32 %v118, %v71
    %s120 = sld [smem:[#allocation2 + $0x101]]
    %v121 = vstv %s120
    %v122 = vmul.f32 %v121, %v74
    %v123 = vadd.f32 %v119, %v122
    %s124 = sld [smem:[#allocation5 + $0x2]]
    %v125 = vstv %s124
    %v126 = vadd.f32 %v123, %v125
    %v127 = vtanh.pop %v126
    %s128 = sld [smem:[#allocation7 + $0x2]]
    %v129 = vstv %s128
    %v130 = vmul.f32 %v129, %v127
    %v131 = vadd.f32 %v112, %v130
    %s132 = sld [smem:[#allocation7 + $0x82]]
    %v133 = vstv %s132
    %v134 = vmul.f32 %v133, %v127
    %v135 = vadd.f32 %v116, %v134
    %s136 = sld [smem:[#allocation2 + $0x180]]
    %v137 = vstv %s136
    %v138 = vmul.f32 %v137, %v71
    %s139 = sld [smem:[#allocation2 + $0x181]]
    %v140 = vstv %s139
    %v141 = vmul.f32 %v140, %v74
    %v142 = vadd.f32 %v138, %v141
    %s143 = sld [smem:[#allocation5 + $0x3]]
    %v144 = vstv %s143
    %v145 = vadd.f32 %v142, %v144
    %v146 = vtanh.pop %v145
    %s147 = sld [smem:[#allocation7 + $0x3]]
    %v148 = vstv %s147
    %v149 = vmul.f32 %v148, %v146
    %v150 = vadd.f32 %v131, %v149
    %s151 = sld [smem:[#allocation7 + $0x83]]
    %v152 = vstv %s151
    %v153 = vmul.f32 %v152, %v146
    %v154 = vadd.f32 %v135, %v153
    %s155 = sld [smem:[#allocation2 + $0x200]]
    %v156 = vstv %s155
    %v157 = vmul.f32 %v156, %v71
    %s158 = sld [smem:[#allocation2 + $0x201]]
    %v159 = vstv %s158
    %v160 = vmul.f32 %v159, %v74
    %v161 = vadd.f32 %v157, %v160
    %s162 = sld [smem:[#allocation5 + $0x4]]
    %v163 = vstv %s162
    %v164 = vadd.f32 %v161, %v163
    %v165 = vtanh.pop %v164
    %s166 = sld [smem:[#allocation7 + $0x4]]
    %v167 = vstv %s166
    %v168 = vmul.f32 %v167, %v165
    %v169 = vadd.f32 %v150, %v168
    %s170 = sld [smem:[#allocation7 + $0x84]]
    %v171 = vstv %s170
    %v172 = vmul.f32 %v171, %v165
    %v173 = vadd.f32 %v154, %v172
    %s174 = sld [smem:[#allocation2 + $0x280]]
    %v175 = vstv %s174
    %v176 = vmul.f32 %v175, %v71
    %s177 = sld [smem:[#allocation2 + $0x281]]
    %v178 = vstv %s177
    %v179 = vmul.f32 %v178, %v74
    %v180 = vadd.f32 %v176, %v179
    %s181 = sld [smem:[#allocation5 + $0x5]]
    %v182 = vstv %s181
    %v183 = vadd.f32 %v180, %v182
    %v184 = vtanh.pop %v183
    %s185 = sld [smem:[#allocation7 + $0x5]]
    %v186 = vstv %s185
    %v187 = vmul.f32 %v186, %v184
    %v188 = vadd.f32 %v169, %v187
    %s189 = sld [smem:[#allocation7 + $0x85]]
    %v190 = vstv %s189
    %v191 = vmul.f32 %v190, %v184
    %v192 = vadd.f32 %v173, %v191
    %s193 = sld [smem:[#allocation2 + $0x300]]
    %v194 = vstv %s193
    %v195 = vmul.f32 %v194, %v71
    %s196 = sld [smem:[#allocation2 + $0x301]]
    %v197 = vstv %s196
    %v198 = vmul.f32 %v197, %v74
    %v199 = vadd.f32 %v195, %v198
    %s200 = sld [smem:[#allocation5 + $0x6]]
    %v201 = vstv %s200
    %v202 = vadd.f32 %v199, %v201
    %v203 = vtanh.pop %v202
    %s204 = sld [smem:[#allocation7 + $0x6]]
    %v205 = vstv %s204
    %v206 = vmul.f32 %v205, %v203
    %v207 = vadd.f32 %v188, %v206
    %s208 = sld [smem:[#allocation7 + $0x86]]
    %v209 = vstv %s208
    %v210 = vmul.f32 %v209, %v203
    %v211 = vadd.f32 %v192, %v210
    %s212 = sld [smem:[#allocation2 + $0x380]]
    %v213 = vstv %s212
    %v214 = vmul.f32 %v213, %v71
    %s215 = sld [smem:[#allocation2 + $0x381]]
    %v216 = vstv %s215
    %v217 = vmul.f32 %v216, %v74
    %v218 = vadd.f32 %v214, %v217
    %s219 = sld [smem:[#allocation5 + $0x7]]
    %v220 = vstv %s219
    %v221 = vadd.f32 %v218, %v220
    %v222 = vtanh.pop %v221
    %s223 = sld [smem:[#allocation7 + $0x7]]
    %v224 = vstv %s223
    %v225 = vmul.f32 %v224, %v222
    %v226 = vadd.f32 %v207, %v225
    %s227 = sld [smem:[#allocation7 + $0x87]]
    %v228 = vstv %s227
    %v229 = vmul.f32 %v228, %v222
    %v230 = vadd.f32 %v211, %v229
    %s231 = sld [smem:[#allocation2 + $0x400]]
    %v232 = vstv %s231
    %v233 = vmul.f32 %v232, %v71
    %s234 = sld [smem:[#allocation2 + $0x401]]
    %v235 = vstv %s234
    %v236 = vmul.f32 %v235, %v74
    %v237 = vadd.f32 %v233, %v236
    %s238 = sld [smem:[#allocation5 + $0x8]]
    %v239 = vstv %s238
    %v240 = vadd.f32 %v237, %v239
    %v241 = vtanh.pop %v240
    %s242 = sld [smem:[#allocation7 + $0x8]]
    %v243 = vstv %s242
    %v244 = vmul.f32 %v243, %v241
    %v245 = vadd.f32 %v226, %v244
    %s246 = sld [smem:[#allocation7 + $0x88]]
    %v247 = vstv %s246
    %v248 = vmul.f32 %v247, %v241
    %v249 = vadd.f32 %v230, %v248
    %s250 = sld [smem:[#allocation2 + $0x480]]
    %v251 = vstv %s250
    %v252 = vmul.f32 %v251, %v71
    %s253 = sld [smem:[#allocation2 + $0x481]]
    %v254 = vstv %s253
    %v255 = vmul.f32 %v254, %v74
    %v256 = vadd.f32 %v252, %v255
    %s257 = sld [smem:[#allocation5 + $0x9]]
    %v258 = vstv %s257
    %v259 = vadd.f32 %v256, %v258
    %v260 = vtanh.pop %v259
    %s261 = sld [smem:[#allocation7 + $0x9]]
    %v262 = vstv %s261
    %v263 = vmul.f32 %v262, %v260
    %v264 = vadd.f32 %v245, %v263
    %s265 = sld [smem:[#allocation7 + $0x89]]
    %v266 = vstv %s265
    %v267 = vmul.f32 %v266, %v260
    %v268 = vadd.f32 %v249, %v267
    %s269 = sld [smem:[#allocation2 + $0x500]]
    %v270 = vstv %s269
    %v271 = vmul.f32 %v270, %v71
    %s272 = sld [smem:[#allocation2 + $0x501]]
    %v273 = vstv %s272
    %v274 = vmul.f32 %v273, %v74
    %v275 = vadd.f32 %v271, %v274
    %s276 = sld [smem:[#allocation5 + $0xa]]
    %v277 = vstv %s276
    %v278 = vadd.f32 %v275, %v277
    %v279 = vtanh.pop %v278
    %s280 = sld [smem:[#allocation7 + $0xa]]
    %v281 = vstv %s280
    %v282 = vmul.f32 %v281, %v279
    %v283 = vadd.f32 %v264, %v282
    %s284 = sld [smem:[#allocation7 + $0x8a]]
    %v285 = vstv %s284
    %v286 = vmul.f32 %v285, %v279
    %v287 = vadd.f32 %v268, %v286
    %s288 = sld [smem:[#allocation2 + $0x580]]
    %v289 = vstv %s288
    %v290 = vmul.f32 %v289, %v71
    %s291 = sld [smem:[#allocation2 + $0x581]]
    %v292 = vstv %s291
    %v293 = vmul.f32 %v292, %v74
    %v294 = vadd.f32 %v290, %v293
    %s295 = sld [smem:[#allocation5 + $0xb]]
    %v296 = vstv %s295
    %v297 = vadd.f32 %v294, %v296
    %v298 = vtanh.pop %v297
    %s299 = sld [smem:[#allocation7 + $0xb]]
    %v300 = vstv %s299
    %v301 = vmul.f32 %v300, %v298
    %v302 = vadd.f32 %v283, %v301
    %s303 = sld [smem:[#allocation7 + $0x8b]]
    %v304 = vstv %s303
    %v305 = vmul.f32 %v304, %v298
    %v306 = vadd.f32 %v287, %v305
    %s307 = sld [smem:[#allocation2 + $0x600]]
    %v308 = vstv %s307
    %v309 = vmul.f32 %v308, %v71
    %s310 = sld [smem:[#allocation2 + $0x601]]
    %v311 = vstv %s310
    %v312 = vmul.f32 %v311, %v74
    %v313 = vadd.f32 %v309, %v312
    %s314 = sld [smem:[#allocation5 + $0xc]]
    %v315 = vstv %s314
    %v316 = vadd.f32 %v313, %v315
    %v317 = vtanh.pop %v316
    %s318 = sld [smem:[#allocation7 + $0xc]]
    %v319 = vstv %s318
    %v320 = vmul.f32 %v319, %v317
    %v321 = vadd.f32 %v302, %v320
    %s322 = sld [smem:[#allocation7 + $0x8c]]
    %v323 = vstv %s322
    %v324 = vmul.f32 %v323, %v317
    %v325 = vadd.f32 %v306, %v324
    %s326 = sld [smem:[#allocation2 + $0x680]]
    %v327 = vstv %s326
    %v328 = vmul.f32 %v327, %v71
    %s329 = sld [smem:[#allocation2 + $0x681]]
    %v330 = vstv %s329
    %v331 = vmul.f32 %v330, %v74
    %v332 = vadd.f32 %v328, %v331
    %s333 = sld [smem:[#allocation5 + $0xd]]
    %v334 = vstv %s333
    %v335 = vadd.f32 %v332, %v334
    %v336 = vtanh.pop %v335
    %s337 = sld [smem:[#allocation7 + $0xd]]
    %v338 = vstv %s337
    %v339 = vmul.f32 %v338, %v336
    %v340 = vadd.f32 %v321, %v339
    %s341 = sld [smem:[#allocation7 + $0x8d]]
    %v342 = vstv %s341
    %v343 = vmul.f32 %v342, %v336
    %v344 = vadd.f32 %v325, %v343
    %s345 = sld [smem:[#allocation2 + $0x700]]
    %v346 = vstv %s345
    %v347 = vmul.f32 %v346, %v71
    %s348 = sld [smem:[#allocation2 + $0x701]]
    %v349 = vstv %s348
    %v350 = vmul.f32 %v349, %v74
    %v351 = vadd.f32 %v347, %v350
    %s352 = sld [smem:[#allocation5 + $0xe]]
    %v353 = vstv %s352
    %v354 = vadd.f32 %v351, %v353
    %v355 = vtanh.pop %v354
    %s356 = sld [smem:[#allocation7 + $0xe]]
    %v357 = vstv %s356
    %v358 = vmul.f32 %v357, %v355
    %v359 = vadd.f32 %v340, %v358
    %s360 = sld [smem:[#allocation7 + $0x8e]]
    %v361 = vstv %s360
    %v362 = vmul.f32 %v361, %v355
    %v363 = vadd.f32 %v344, %v362
    %s364 = sld [smem:[#allocation2 + $0x780]]
    %v365 = vstv %s364
    %v366 = vmul.f32 %v365, %v71
    %s367 = sld [smem:[#allocation2 + $0x781]]
    %v368 = vstv %s367
    %v369 = vmul.f32 %v368, %v74
    %v370 = vadd.f32 %v366, %v369
    %s371 = sld [smem:[#allocation5 + $0xf]]
    %v372 = vstv %s371
    %v373 = vadd.f32 %v370, %v372
    %v374 = vtanh.pop %v373
    %s375 = sld [smem:[#allocation7 + $0xf]]
    %v376 = vstv %s375
    %v377 = vmul.f32 %v376, %v374
    %v378 = vadd.f32 %v359, %v377
    %s379 = sld [smem:[#allocation7 + $0x8f]]
    %v380 = vstv %s379
    %v381 = vmul.f32 %v380, %v374
    %v382 = vadd.f32 %v363, %v381
    %383 = vst [vmem:[#allocation10] sm:$0xff] %v378
    %s384 = scalar_lea.vmem [#allocation10], %s72
    %385 = vst [vmem:[%s384] sm:$0xff] %v382
    // Predicated region
    $region38: #{tpu_custom_call.1} parent=1 // pred_check
      _
    $region39: #{tpu_custom_call.1} parent=1 // pred_check_branch
      %387 = sbr.rel (0) target = $region41
    $region40: #{tpu_custom_call.1} parent=1 // pred_region
      %s389 = ssub.s32 256, 256
      %390 = vsyncadd [#allocation3], %s389
      %s391 = sshll.u32 [#allocation10], 4
      %s392 = int_to_ptr.vmem [resolvable:$true] %s391
      %397 = dma.vmem_to_hbm [thread:$0]  %s392, 256, %s5, [#allocation3], 128, 128, 8
    $region41: #{tpu_custom_call.1} parent=1 // pred_fallthru
      _
    // Predicated region
    $region42: #{tpu_custom_call.1} parent=1 // pred_check
      _
    $region43: #{tpu_custom_call.1} parent=1 // pred_check_branch
      %399 = sbr.rel (0) target = $region45
    $region44: #{tpu_custom_call.1} parent=1 // pred_region
      %400 = dma.done [#allocation3], 256
    $region45: #{tpu_custom_call.1} parent=1 // pred_fallthru
      _
    %401 = vsyncpa [#allocation3], 1
    %402 = vsyncpa [#allocation4], 1
    %403 = vsyncpa [#allocation6], 1
    %404 = vsyncpa [#allocation9], 1

</llo_original>
